<compile_context>
chip_gen: v7x
topology: tpu7x:2x2x1
jax: 0.10.0
libtpu: 0.0.40
codegen_flags: <defaults>
</compile_context>

<pallas_src>
import functools

import jax
import jax.numpy as jnp
from jax.experimental import pallas as pl
from jax.experimental.pallas import tpu as pltpu


NEG_SLOPE = 0.01  # F.leaky_relu default


def _leaky_relu(v):
    return jnp.where(v > 0, v, NEG_SLOPE * v)


def _round_up(n, m):
    return ((n + m - 1) // m) * m


def residual_block_kernel(x_ref, w_ref, b_ref, o_ref):
    # x_ref:(TB, Cin_p), w_ref:(Cin_p, 2*Cout_p), b_ref:(1, 2*Cout_p) f32
    cout = o_ref.shape[-1]
    # Single fused MXU matmul for both linears, f32 accumulation.
    acc = jnp.dot(x_ref[...], w_ref[...], preferred_element_type=jnp.float32)
    acc = acc + b_ref[...]                      # bias broadcast (1, 2C) -> (TB, 2C)
    y = _leaky_relu(acc[:, :cout])              # branch 1: Linear + leaky_relu
    z = acc[:, cout:]                           # branch 2: Linear
    o_ref[...] = _leaky_relu(z + y).astype(o_ref.dtype)


@functools.partial(jax.jit, static_argnames=("block_b", "use_bf16"))
def residual_block(x, w1, b1, w2, b2, *, block_b=128, use_bf16=False):
    """x: (B, Cin); w1,w2: (Cin, Cout) [pre-transposed]; b1,b2: (1, Cout) -> (B, Cout)."""
    B, Cin = x.shape
    Cout = w1.shape[1]

    # --- lane-dense / MXU-friendly padding --------------------------------
    cin_p = _round_up(max(Cin, 128), 128)
    cout_p = _round_up(max(Cout, 128), 128)
    tb = min(block_b, _round_up(B, 8))          # batch tile, multiple of 8 sublanes
    b_p = _round_up(B, tb)

    op_dtype = jnp.bfloat16 if use_bf16 else jnp.float32

    # Fused, padded weight (Cin_p, 2*Cout_p) and bias (1, 2*Cout_p).
    w_cat = jnp.zeros((cin_p, 2 * cout_p), op_dtype)
    w_cat = w_cat.at[:Cin, :Cout].set(w1.astype(op_dtype))
    w_cat = w_cat.at[:Cin, cout_p:cout_p + Cout].set(w2.astype(op_dtype))

    b_cat = jnp.zeros((1, 2 * cout_p), jnp.float32)
    b_cat = b_cat.at[:, :Cout].set(b1.astype(jnp.float32))
    b_cat = b_cat.at[:, cout_p:cout_p + Cout].set(b2.astype(jnp.float32))

    x_p = jnp.zeros((b_p, cin_p), op_dtype)
    x_p = x_p.at[:B, :Cin].set(x.astype(op_dtype))

    out = pl.pallas_call(
        residual_block_kernel,
        out_shape=jax.ShapeDtypeStruct((b_p, cout_p), jnp.float32),
        grid=(b_p // tb,),
        in_specs=[
            pl.BlockSpec((tb, cin_p), lambda i: (i, 0)),          # x tile, pipelined
            pl.BlockSpec((cin_p, 2 * cout_p), lambda i: (0, 0)),  # fused weight, resident
            pl.BlockSpec((1, 2 * cout_p), lambda i: (0, 0)),      # fused bias, resident
        ],
        out_specs=pl.BlockSpec((tb, cout_p), lambda i: (i, 0)),
        compiler_params=pltpu.CompilerParams(
            dimension_semantics=("parallel",),   # megacore-shardable batch axis
        ),
    )(x_p, w_cat, b_cat)

    # Strip batch / feature padding.
    return out[:B, :Cout]


def init_params(key, in_channels, out_channels):
    """Deterministic init mimicking nn.Linear default (U[-1/sqrt(in), 1/sqrt(in)])."""
    k1, k2, k3, k4 = jax.random.split(key, 4)
    bound = 1.0 / jnp.sqrt(jnp.float32(in_channels))
    # Stored as (in, out) = transpose of PyTorch's (out, in) weight layout.
    w1 = jax.random.uniform(k1, (in_channels, out_channels), jnp.float32, -bound, bound)
    b1 = jax.random.uniform(k2, (1, out_channels), jnp.float32, -bound, bound)
    w2 = jax.random.uniform(k3, (in_channels, out_channels), jnp.float32, -bound, bound)
    b2 = jax.random.uniform(k4, (1, out_channels), jnp.float32, -bound, bound)
    return w1, b1, w2, b2


if __name__ == "__main__":
    key = jax.random.PRNGKey(0)
    k_x, k_p = jax.random.split(key)

    batch, in_channels, out_channels = 8, 32, 32
    x = jax.random.normal(k_x, (batch, in_channels), jnp.float32)
    w1, b1, w2, b2 = init_params(k_p, in_channels, out_channels)

    out = residual_block(x, w1, b1, w2, b2)          # f32 matmul path (exact semantics)
    out = jax.block_until_ready(out)
    assert out.shape == (batch, out_channels)

    # Pure-JAX reference of the same math (all f32).
    y_lin = x @ w1 + b1
    y_ref = jnp.where(y_lin > 0, y_lin, NEG_SLOPE * y_lin)
    s_ref = (x @ w2 + b2) + y_ref
    ref = jnp.where(s_ref > 0, s_ref, NEG_SLOPE * s_ref)
    assert jnp.allclose(out, ref, atol=1e-5, rtol=1e-5), "mismatch vs reference (f32)"

    # Also exercise the bf16-operand fast path (f32 accumulation / epilogue).
    out_bf = jax.block_until_ready(residual_block(x, w1, b1, w2, b2, use_bf16=True))
    assert jnp.allclose(out_bf, ref, atol=1e-2, rtol=1e-2), "mismatch vs reference (bf16)"

    # TODO(synk): for production cGAN use, fuse several ResidualBlocks (or the
    # whole trunk) into one pallas_call — per-call overhead dominates at 8x32x32.

    print("KERNEL_OK")
</pallas_src>

<mosaic_0001>
module attributes {stable_mosaic.version = 11 : i64} {
  func.func @residual_block_kernel(%arg0: i32, %arg1: memref<8x128xf32, #tpu.memory_space<vmem>>, %arg2: memref<128x256xf32, #tpu.memory_space<vmem>>, %arg3: memref<1x256xf32, #tpu.memory_space<vmem>>, %arg4: memref<8x128xf32, #tpu.memory_space<vmem>>) attributes {dimension_semantics = [#tpu.dimension_semantics<parallel>], iteration_bounds = array<i64: 1>, scalar_prefetch = 0 : i64, scratch_operands = 0 : i64, tpu.core_type = #tpu.core_type<tc>, window_params = [{transform_indices = @transform_0, window_bounds = array<i64: 8, 128>}, {pipeline_mode = #tpu.pipeline_mode<synchronous>, transform_indices = @transform_1, window_bounds = array<i64: 128, 256>}, {pipeline_mode = #tpu.pipeline_mode<synchronous>, transform_indices = @transform_2, window_bounds = array<i64: 1, 256>}, {transform_indices = @transform_3, window_bounds = array<i64: 8, 128>}]} {
    %c0 = arith.constant 0 : index
    %c0_0 = arith.constant 0 : index
    %0 = vector.load %arg1[%c0, %c0_0] : memref<8x128xf32, #tpu.memory_space<vmem>>, vector<8x128xf32>
    %c0_1 = arith.constant 0 : index
    %c0_2 = arith.constant 0 : index
    %1 = vector.load %arg2[%c0_1, %c0_2] : memref<128x256xf32, #tpu.memory_space<vmem>>, vector<128x256xf32>
    %cst = arith.constant dense<0.000000e+00> : vector<8x256xf32>
    %2 = tpu.matmul %0, %1, %cst {dimension_numbers = #tpu.dot_dimension_numbers<[1], [0], [0], [1], [0, 0, 1, 1], [], []>} : vector<8x128xf32>, vector<128x256xf32>, vector<8x256xf32> -> vector<8x256xf32>
    %c0_3 = arith.constant 0 : index
    %c0_4 = arith.constant 0 : index
    %3 = vector.load %arg3[%c0_3, %c0_4] : memref<1x256xf32, #tpu.memory_space<vmem>>, vector<1x256xf32>
    %4 = vector.broadcast %3 : vector<1x256xf32> to vector<8x256xf32>
    %5 = arith.addf %2, %4 : vector<8x256xf32>
    %6 = vector.extract_strided_slice %5 {offsets = [0, 0], sizes = [8, 128], strides = [1, 1]} : vector<8x256xf32> to vector<8x128xf32>
    %cst_5 = arith.constant 0.000000e+00 : f32
    %7 = vector.broadcast %cst_5 : f32 to vector<8x128xf32>
    %8 = arith.cmpf ogt, %6, %7 : vector<8x128xf32>
    %cst_6 = arith.constant 0.00999999977 : f32
    %9 = vector.broadcast %cst_6 : f32 to vector<8x128xf32>
    %10 = arith.mulf %9, %6 : vector<8x128xf32>
    %11 = arith.select %8, %6, %10 : vector<8x128xi1>, vector<8x128xf32>
    %12 = vector.extract_strided_slice %5 {offsets = [0, 128], sizes = [8, 128], strides = [1, 1]} : vector<8x256xf32> to vector<8x128xf32>
    %13 = arith.addf %12, %11 : vector<8x128xf32>
    %cst_7 = arith.constant 0.000000e+00 : f32
    %14 = vector.broadcast %cst_7 : f32 to vector<8x128xf32>
    %15 = arith.cmpf ogt, %13, %14 : vector<8x128xf32>
    %cst_8 = arith.constant 0.00999999977 : f32
    %16 = vector.broadcast %cst_8 : f32 to vector<8x128xf32>
    %17 = arith.mulf %16, %13 : vector<8x128xf32>
    %18 = arith.select %15, %13, %17 : vector<8x128xi1>, vector<8x128xf32>
    %c0_9 = arith.constant 0 : index
    %c0_10 = arith.constant 0 : index
    %19 = vector.load %arg4[%c0_9, %c0_10] : memref<8x128xf32, #tpu.memory_space<vmem>>, vector<8x128xf32>
    tpu.vector_store %arg4[%c0_9, %c0_10], %18 {strides = array<i32>} : memref<8x128xf32, #tpu.memory_space<vmem>>, vector<8x128xf32>,
    return
  }
  func.func @transform_0(%arg0: i32) -> (i32, i32) {
    %c0_i32 = arith.constant 0 : i32
    %c0_i32_0 = arith.constant 0 : i32
    return %arg0, %c0_i32 : i32, i32
  }
  func.func @transform_1(%arg0: i32) -> (i32, i32) {
    %c0_i32 = arith.constant 0 : i32
    %c0_i32_0 = arith.constant 0 : i32
    %c0_i32_1 = arith.constant 0 : i32
    return %c0_i32, %c0_i32_0 : i32, i32
  }
  func.func @transform_2(%arg0: i32) -> (i32, i32) {
    %c0_i32 = arith.constant 0 : i32
    %c0_i32_0 = arith.constant 0 : i32
    %c0_i32_1 = arith.constant 0 : i32
    return %c0_i32, %c0_i32_0 : i32, i32
  }
  func.func @transform_3(%arg0: i32) -> (i32, i32) {
    %c0_i32 = arith.constant 0 : i32
    %c0_i32_0 = arith.constant 0 : i32
    return %arg0, %c0_i32 : i32, i32
  }
}

</mosaic_0001>

<llo_original>
// kernel: residual_block.1
$region0: #{residual_block.1}
  #allocation0 [shape = 'u32[]', space=smem, size = 0x4, offset = 0x4, fixed_abs, tag = 'smem constant byte address 0x4 - core index']
  #allocation1 [shape = 'u32[144,128]{1,0:T(1,128)}', space=vmem, size = 0x12000, scoped, tag = 'internal scratch']
  %s0 = inlined_call_operand.vmem [shape: f32[8,128], index: 0, kind: input, shape index: {}]
  %s1 = inlined_call_operand.vmem [shape: f32[128,256], index: 1, kind: input, shape index: {}]
  %s2 = inlined_call_operand.vmem [shape: f32[1,256], index: 2, kind: input, shape index: {}]
  %s3 = inlined_call_operand.hbm [shape: f32[8,128], index: 3, kind: output, shape index: {}]
  %s4 = sld [smem:[#allocation0]]
  $region22: #{residual_block.1} parent=0
    _
  %s6 = ssub.s32 1, %s4
  %s7 = scalar_select 0, %s6, %s4
  $region1: #{residual_block.1} parent=0
    #allocation2 [shape = 'u8[4096]{0}', space=vmem, size = 0x1000, scoped, tag = 'output window, operand 0, single buffered']
    #allocation3 [shape = 's32[1]{0}', space=sflag, size = 0x4, scoped, tag = 'scoped memory for residual_block.1']
    %8 = vsyncpa [#allocation3], 0
    // Predicated region
    $region2: #{residual_block.1} parent=1 // pred_check
      _
    $region3: #{residual_block.1} parent=1 // pred_check_branch
      %10 = sbr.rel (0) target = $region5
    $region4: #{residual_block.1} parent=1 // pred_region
      _
    $region5: #{residual_block.1} parent=1 // pred_fallthru
      _
    // Predicated region
    $region6: #{residual_block.1} parent=1 // pred_check
      _
    $region7: #{residual_block.1} parent=1 // pred_check_branch
      %12 = sbr.rel (0) target = $region9
    $region8: #{residual_block.1} parent=1 // pred_region
      _
    $region9: #{residual_block.1} parent=1 // pred_fallthru
      _
    // Predicated region
    $region10: #{residual_block.1} parent=1 // pred_check
      _
    $region11: #{residual_block.1} parent=1 // pred_check_branch
      %14 = sbr.rel (0) target = $region13
    $region12: #{residual_block.1} parent=1 // pred_region
      _
    $region13: #{residual_block.1} parent=1 // pred_fallthru
      _
    %v15 = vld [vmem:[%s0] sm:$0xff]
    %v16 = vld [vmem:[%s1] sm:$0xff]
    %v17 = vld [vmem:[%s1 + $0x8] sm:$0xff]
    %v18 = vld [vmem:[%s1 + $0x10] sm:$0xff]
    %v19 = vld [vmem:[%s1 + $0x18] sm:$0xff]
    %v20 = vld [vmem:[%s1 + $0x20] sm:$0xff]
    %v21 = vld [vmem:[%s1 + $0x28] sm:$0xff]
    %v22 = vld [vmem:[%s1 + $0x30] sm:$0xff]
    %v23 = vld [vmem:[%s1 + $0x38] sm:$0xff]
    %v24 = vld [vmem:[%s1 + $0x40] sm:$0xff]
    %v25 = vld [vmem:[%s1 + $0x48] sm:$0xff]
    %v26 = vld [vmem:[%s1 + $0x50] sm:$0xff]
    %v27 = vld [vmem:[%s1 + $0x58] sm:$0xff]
    %v28 = vld [vmem:[%s1 + $0x60] sm:$0xff]
    %v29 = vld [vmem:[%s1 + $0x68] sm:$0xff]
    %v30 = vld [vmem:[%s1 + $0x70] sm:$0xff]
    %v31 = vld [vmem:[%s1 + $0x78] sm:$0xff]
    %v32 = vld [vmem:[%s1 + $0x80] sm:$0xff]
    %v33 = vld [vmem:[%s1 + $0x88] sm:$0xff]
    %v34 = vld [vmem:[%s1 + $0x90] sm:$0xff]
    %v35 = vld [vmem:[%s1 + $0x98] sm:$0xff]
    %v36 = vld [vmem:[%s1 + $0xa0] sm:$0xff]
    %v37 = vld [vmem:[%s1 + $0xa8] sm:$0xff]
    %v38 = vld [vmem:[%s1 + $0xb0] sm:$0xff]
    %v39 = vld [vmem:[%s1 + $0xb8] sm:$0xff]
    %v40 = vld [vmem:[%s1 + $0xc0] sm:$0xff]
    %v41 = vld [vmem:[%s1 + $0xc8] sm:$0xff]
    %v42 = vld [vmem:[%s1 + $0xd0] sm:$0xff]
    %v43 = vld [vmem:[%s1 + $0xd8] sm:$0xff]
    %v44 = vld [vmem:[%s1 + $0xe0] sm:$0xff]
    %v45 = vld [vmem:[%s1 + $0xe8] sm:$0xff]
    %v46 = vld [vmem:[%s1 + $0xf0] sm:$0xff]
    %v47 = vld [vmem:[%s1 + $0xf8] sm:$0xff]
    %v48 = vld [vmem:[%s2] sm:$0x3]
    %v50 = vlaneseq
    %v51 = vshrl.u32 %v50, 7
    %v52 = vsub.s32 0, %v51
    %v53 = vrot.slane %v48, %v52
    %v54 = vlaneseq
    %v55 = vshrl.u32 %v54, 7
    %v56 = vsub.s32 1, %v55
    %v57 = vrot.slane %v48, %v56
    %60 = vmatprep.subr.mxu0 %v17
    %61 = vmatpush1.msra.mxu0 %v16
    %62 = vmatprep.subr.mxu0 %v19
    %63 = vmatpush1.msra.mxu0 %v18
    %64 = vmatprep.subr.mxu0 %v21
    %65 = vmatpush1.msra.mxu0 %v20
    %66 = vmatprep.subr.mxu0 %v23
    %67 = vmatpush1.msra.mxu0 %v22
    %68 = vmatprep.subr.mxu0 %v25
    %69 = vmatpush1.msra.mxu0 %v24
    %70 = vmatprep.subr.mxu0 %v27
    %71 = vmatpush1.msra.mxu0 %v26
    %72 = vmatprep.subr.mxu0 %v29
    %73 = vmatpush1.msra.mxu0 %v28
    %74 = vmatprep.subr.mxu0 %v31
    %75 = vmatpush1.msra.mxu0 %v30
    %76 = vmatprep.subr.mxu0 %v33
    %77 = vmatpush1.msra.mxu0 %v32
    %78 = vmatprep.subr.mxu0 %v35
    %79 = vmatpush1.msra.mxu0 %v34
    %80 = vmatprep.subr.mxu0 %v37
    %81 = vmatpush1.msra.mxu0 %v36
    %82 = vmatprep.subr.mxu0 %v39
    %83 = vmatpush1.msra.mxu0 %v38
    %84 = vmatprep.subr.mxu0 %v41
    %85 = vmatpush1.msra.mxu0 %v40
    %86 = vmatprep.subr.mxu0 %v43
    %87 = vmatpush1.msra.mxu0 %v42
    %88 = vmatprep.subr.mxu0 %v45
    %89 = vmatpush1.msra.mxu0 %v44
    %90 = vmatprep.subr.mxu0 %v47
    %91 = vmatpush1.msra.mxu0 %v46
    %92 = vmatprep.subr.mxu0 0.0
    %93 = vmatpush1.msra.mxu0 0.0
    %94 = vmatprep.subr.mxu0 0.0
    %95 = vmatpush1.msra.mxu0 0.0
    %96 = vmatprep.subr.mxu0 0.0
    %97 = vmatpush1.msra.mxu0 0.0
    %98 = vmatprep.subr.mxu0 0.0
    %99 = vmatpush1.msra.mxu0 0.0
    %100 = vmatprep.subr.mxu0 0.0
    %101 = vmatpush1.msra.mxu0 0.0
    %102 = vmatprep.subr.mxu0 0.0
    %103 = vmatpush1.msra.mxu0 0.0
    %104 = vmatprep.subr.mxu0 0.0
    %105 = vmatpush1.msra.mxu0 0.0
    %106 = vmatprep.subr.mxu0 0.0
    %107 = vmatpush1.msra.mxu0 0.0
    %108 = vmatprep.subr.mxu0 0.0
    %109 = vmatpush1.msra.mxu0 0.0
    %110 = vmatprep.subr.mxu0 0.0
    %111 = vmatpush1.msra.mxu0 0.0
    %112 = vmatprep.subr.mxu0 0.0
    %113 = vmatpush1.msra.mxu0 0.0
    %114 = vmatprep.subr.mxu0 0.0
    %115 = vmatpush1.msra.mxu0 0.0
    %116 = vmatprep.subr.mxu0 0.0
    %117 = vmatpush1.msra.mxu0 0.0
    %118 = vmatprep.subr.mxu0 0.0
    %119 = vmatpush1.msra.mxu0 0.0
    %120 = vmatprep.subr.mxu0 0.0
    %121 = vmatpush1.msra.mxu0 0.0
    %122 = vmatprep.subr.mxu0 0.0
    %123 = vmatpush1.msra.mxu0 0.0
    %124 = vmatprep.mubr.f32.mxu0 0.0
    %125 = vmatmul.mubr.f32.gmra.mrb[0].mxu0 %v15
    %v126 = vpop.f32.mrb[0].mxu0
    %v127 = vadd.f32 %v53, %v126
    %v128 = vpop.f32.mrb[0].mxu0
    %v129 = vadd.f32 %v57, %v128
    %130 = vdwg.mxu0
    %vm131 = vcmp.gt.f32.partialorder %v127, 0.0
    %v132 = vmul.f32 %v127, 0.01
    %v133 = vsel %vm131, %v127, %v132
    %v134 = vadd.f32 %v129, %v133
    %vm135 = vcmp.gt.f32.partialorder %v134, 0.0
    %v136 = vmul.f32 %v134, 0.01
    %v137 = vsel %vm135, %v134, %v136
    %138 = vst [vmem:[#allocation2] sm:$0xff] %v137
    // Predicated region
    $region14: #{residual_block.1} parent=1 // pred_check
      _
    $region15: #{residual_block.1} parent=1 // pred_check_branch
      %140 = sbr.rel (0) target = $region17
    $region16: #{residual_block.1} parent=1 // pred_region
      %s142 = ssub.s32 128, 128
      %143 = vsyncadd [#allocation3], %s142
      %s145 = sshll.u32 [#allocation2], 4
      %s146 = int_to_ptr.vmem [resolvable:$true] %s145
      %148 = dma.vmem_to_hbm [thread:$0]  %s146, 128, %s3, [#allocation3]
    $region17: #{residual_block.1} parent=1 // pred_fallthru
      _
    // Predicated region
    $region18: #{residual_block.1} parent=1 // pred_check
      _
    $region19: #{residual_block.1} parent=1 // pred_check_branch
      %150 = sbr.rel (0) target = $region21
    $region20: #{residual_block.1} parent=1 // pred_region
      %151 = dma.done [#allocation3], 128
    $region21: #{residual_block.1} parent=1 // pred_fallthru
      _
    %152 = vsyncpa [#allocation3], 1

</llo_original>
